<compile_context>
chip_gen: v7x
topology: tpu7x:2x2x1
jax: 0.10.0
libtpu: 0.0.40
codegen_flags: <defaults>
</compile_context>

<pallas_src>
import functools

import jax
import jax.numpy as jnp
from jax.experimental import pallas as pl
from jax.experimental.pallas import tpu as pltpu


# ----------------------------- kernels ------------------------------------


def _combine_sum_kernel(x_ref, w_ref, b_ref, y_ref, o_ref):
    # x_ref: (1, Cin, t_hw)  w_ref: (Cout, Cin)  b_ref: (Cout, 1)
    # y_ref: (1, Cout, t_hw) o_ref: (1, Cout, t_hw)
    x = x_ref[0]                                                   # (Cin, t_hw)
    h = jnp.dot(w_ref[...], x.astype(w_ref.dtype),
                preferred_element_type=jnp.float32)                # (Cout, t_hw)
    o_ref[0] = (h + b_ref[...] + y_ref[0].astype(jnp.float32)).astype(o_ref.dtype)


def _combine_cat_kernel(x_ref, w_ref, b_ref, y_ref, o_ref, *, c_out):
    # x_ref: (1, Cin, t_hw)  w_ref: (Cout, Cin)  b_ref: (Cout, 1)
    # y_ref: (1, Cy, t_hw)   o_ref: (1, Cout + Cy, t_hw)
    x = x_ref[0]                                                   # (Cin, t_hw)
    h = jnp.dot(w_ref[...], x.astype(w_ref.dtype),
                preferred_element_type=jnp.float32) + b_ref[...]   # (Cout, t_hw)
    o_ref[0, :c_out, :] = h.astype(o_ref.dtype)                    # conv channels
    o_ref[0, c_out:, :] = y_ref[0].astype(o_ref.dtype)             # fused concat


# ----------------------------- wrapper --------------------------------------


def _choose_hw_tile(hw, cin, cy, ctot, itemsize=4,
                    budget_bytes=24 * 1024 * 1024):
    """Largest lane tile (multiple of 128, or full H*W) fitting a conservative
    VMEM budget for the double-buffered x / y / out tiles (safe on v7x's
    default 32 MiB scoped limit; v5e/v6e have more headroom)."""
    per_col = 2 * itemsize * (cin + cy + ctot)     # double-buffered tiles
    max_cols = max(128, budget_bytes // max(per_col, 1))
    if hw <= max_cols:
        return hw                                  # full spatial extent: always legal
    return max(128, min((max_cols // 128) * 128, 16384))


def combine_forward(x, y, weight, bias, method="cat"):
    """Pallas equivalent of Combine.forward, in native NCHW layout.

    x:      (N, Cin, H, W)
    y:      (N, Cy,  H, W)      (Cy == Cout for method='sum')
    weight: (Cout, Cin)         -- torch conv1x1 weight[:, :, 0, 0]
    bias:   (Cout,)
    """
    assert method in ("cat", "sum"), f"Method {method} not recognized."
    n, cin, hgt, wid = x.shape
    hw = hgt * wid
    cout, cin_w = weight.shape
    assert cin_w == cin
    cy = y.shape[1]
    assert y.shape == (n, cy, hgt, wid)
    if method == "sum":
        assert cy == cout
    ctot = cout + cy if method == "cat" else cout

    # metadata-only reshapes (no HBM traffic)
    x3 = x.reshape(n, cin, hw)
    y3 = y.reshape(n, cy, hw)
    bias2d = bias.reshape(cout, 1).astype(jnp.float32)

    t_hw = _choose_hw_tile(hw, cin, cy, ctot, itemsize=max(x.dtype.itemsize, 4))
    grid = (n, pl.cdiv(hw, t_hw))

    x_spec = pl.BlockSpec((1, cin, t_hw), lambda i, j: (i, 0, j))
    w_spec = pl.BlockSpec((cout, cin), lambda i, j: (0, 0))
    b_spec = pl.BlockSpec((cout, 1), lambda i, j: (0, 0))
    y_spec = pl.BlockSpec((1, cy, t_hw), lambda i, j: (i, 0, j))
    o_spec = pl.BlockSpec((1, ctot, t_hw), lambda i, j: (i, 0, j))

    out_shape = jax.ShapeDtypeStruct((n, ctot, hw), x.dtype)

    itemsize = x.dtype.itemsize
    bytes_accessed = int(itemsize * n * hw * (cin + cy + ctot)
                         + 4 * (cout * cin + cout))
    cost = pl.CostEstimate(flops=2 * n * hw * cin * cout,
                           transcendentals=0,
                           bytes_accessed=bytes_accessed)

    kernel = (_combine_sum_kernel if method == "sum"
              else functools.partial(_combine_cat_kernel, c_out=cout))

    out3 = pl.pallas_call(
        kernel,
        out_shape=out_shape,
        grid_spec=pltpu.PrefetchScalarGridSpec(
            num_scalar_prefetch=0,
            grid=grid,
            in_specs=[x_spec, w_spec, b_spec, y_spec],
            out_specs=o_spec,
        ),
        compiler_params=pltpu.CompilerParams(
            dimension_semantics=("parallel", "parallel")),
        cost_estimate=cost,
    )(x3, weight, bias2d, y3)

    return out3.reshape(n, ctot, hgt, wid)


# ----------------------------- reference -----------------------------------


def combine_reference(x, y, weight, bias, method="cat"):
    # pure-JAX reference for correctness checking (weight is (Cout, Cin))
    h = jnp.einsum("nchw,oc->nohw", x, weight) + bias[None, :, None, None]
    if method == "cat":
        return jnp.concatenate([h, y], axis=1)
    return h + y


# ----------------------------- main -----------------------------------------


if __name__ == "__main__":
    key = jax.random.PRNGKey(0)
    k_x, k_y1, k_y2, k_w, k_b = jax.random.split(key, 5)

    N, Cin, Cout, H, W = 2, 4, 8, 16, 16

    x = jax.random.normal(k_x, (N, Cin, H, W), dtype=jnp.float32)
    y_cat = jax.random.normal(k_y1, (N, Cin, H, W), dtype=jnp.float32)   # concat partner
    y_sum = jax.random.normal(k_y2, (N, Cout, H, W), dtype=jnp.float32)  # sum partner

    # Conv1x1 params: torch weight (Cout, Cin, 1, 1) -> (Cout, Cin) here.
    fan_in = float(Cin)
    weight = (jax.random.uniform(k_w, (Cout, Cin), dtype=jnp.float32) - 0.5) * (2.0 / fan_in**0.5)
    bias = (jax.random.uniform(k_b, (Cout,), dtype=jnp.float32) - 0.5) * (2.0 / fan_in**0.5)

    # method = 'cat'
    out_cat = combine_forward(x, y_cat, weight, bias, method="cat")
    jax.block_until_ready(out_cat)
    ref_cat = combine_reference(x, y_cat, weight, bias, method="cat")
    assert out_cat.shape == (N, Cout + Cin, H, W)
    assert jnp.allclose(out_cat, ref_cat, atol=1e-5, rtol=1e-5)

    # method = 'sum'
    out_sum = combine_forward(x, y_sum, weight, bias, method="sum")
    jax.block_until_ready(out_sum)
    ref_sum = combine_reference(x, y_sum, weight, bias, method="sum")
    assert out_sum.shape == (N, Cout, H, W)
    assert jnp.allclose(out_sum, ref_sum, atol=1e-5, rtol=1e-5)

    print("KERNEL_OK")
</pallas_src>

<mosaic_0001>
module attributes {stable_mosaic.version = 11 : i64} {
  func.func @_combine_cat_kernel(%arg0: i32, %arg1: i32, %arg2: memref<1x4x256xf32, #tpu.memory_space<vmem>>, %arg3: memref<8x4xf32, #tpu.memory_space<vmem>>, %arg4: memref<8x1xf32, #tpu.memory_space<vmem>>, %arg5: memref<1x4x256xf32, #tpu.memory_space<vmem>>, %arg6: memref<1x12x256xf32, #tpu.memory_space<vmem>>) attributes {dimension_semantics = [#tpu.dimension_semantics<parallel>, #tpu.dimension_semantics<parallel>], iteration_bounds = array<i64: 2, 1>, scalar_prefetch = 0 : i64, scratch_operands = 0 : i64, tpu.core_type = #tpu.core_type<tc>, window_params = [{transform_indices = @transform_0, window_bounds = array<i64: 1, 4, 256>}, {pipeline_mode = #tpu.pipeline_mode<synchronous>, transform_indices = @transform_1, window_bounds = array<i64: 8, 4>}, {pipeline_mode = #tpu.pipeline_mode<synchronous>, transform_indices = @transform_2, window_bounds = array<i64: 8, 1>}, {transform_indices = @transform_3, window_bounds = array<i64: 1, 4, 256>}, {transform_indices = @transform_4, window_bounds = array<i64: 1, 12, 256>}]} {
    %c0 = arith.constant 0 : index
    %c0_0 = arith.constant 0 : index
    %c0_1 = arith.constant 0 : index
    %0 = vector.load %arg2[%c0, %c0_0, %c0_1] : memref<1x4x256xf32, #tpu.memory_space<vmem>>, vector<1x4x256xf32>
    %1 = vector.shape_cast %0 : vector<1x4x256xf32> to vector<4x256xf32>
    %c0_2 = arith.constant 0 : index
    %c0_3 = arith.constant 0 : index
    %2 = vector.load %arg3[%c0_2, %c0_3] : memref<8x4xf32, #tpu.memory_space<vmem>>, vector<8x4xf32>
    %cst = arith.constant dense<0.000000e+00> : vector<8x256xf32>
    %3 = tpu.matmul %2, %1, %cst {dimension_numbers = #tpu.dot_dimension_numbers<[1], [0], [0], [1], [0, 0, 1, 1], [], []>} : vector<8x4xf32>, vector<4x256xf32>, vector<8x256xf32> -> vector<8x256xf32>
    %c0_4 = arith.constant 0 : index
    %c0_5 = arith.constant 0 : index
    %4 = vector.load %arg4[%c0_4, %c0_5] : memref<8x1xf32, #tpu.memory_space<vmem>>, vector<8x1xf32>
    %5 = vector.broadcast %4 : vector<8x1xf32> to vector<8x256xf32>
    %6 = arith.addf %3, %5 : vector<8x256xf32>
    %c0_6 = arith.constant 0 : index
    %c0_7 = arith.constant 0 : index
    %c0_8 = arith.constant 0 : index
    %7 = vector.load %arg6[%c0_6, %c0_7, %c0_8] : memref<1x12x256xf32, #tpu.memory_space<vmem>>, vector<1x8x256xf32>
    %8 = vector.shape_cast %7 : vector<1x8x256xf32> to vector<8x256xf32>
    %9 = vector.shape_cast %6 : vector<8x256xf32> to vector<1x8x256xf32>
    tpu.vector_store %arg6[%c0_6, %c0_7, %c0_8], %9 {strides = array<i32>} : memref<1x12x256xf32, #tpu.memory_space<vmem>>, vector<1x8x256xf32>,
    %c0_9 = arith.constant 0 : index
    %c0_10 = arith.constant 0 : index
    %c0_11 = arith.constant 0 : index
    %10 = vector.load %arg5[%c0_9, %c0_10, %c0_11] : memref<1x4x256xf32, #tpu.memory_space<vmem>>, vector<1x4x256xf32>
    %11 = vector.shape_cast %10 : vector<1x4x256xf32> to vector<4x256xf32>
    %c0_12 = arith.constant 0 : index
    %c8 = arith.constant 8 : index
    %c0_13 = arith.constant 0 : index
    %12 = vector.load %arg6[%c0_12, %c8, %c0_13] : memref<1x12x256xf32, #tpu.memory_space<vmem>>, vector<1x4x256xf32>
    %13 = vector.shape_cast %12 : vector<1x4x256xf32> to vector<4x256xf32>
    %14 = vector.shape_cast %11 : vector<4x256xf32> to vector<1x4x256xf32>
    tpu.vector_store %arg6[%c0_12, %c8, %c0_13], %14 {strides = array<i32>} : memref<1x12x256xf32, #tpu.memory_space<vmem>>, vector<1x4x256xf32>,
    return
  }
  func.func @transform_0(%arg0: i32, %arg1: i32) -> (i32, i32, i32) {
    %c0_i32 = arith.constant 0 : i32
    %c0_i32_0 = arith.constant 0 : i32
    return %arg0, %c0_i32, %arg1 : i32, i32, i32
  }
  func.func @transform_1(%arg0: i32, %arg1: i32) -> (i32, i32) {
    %c0_i32 = arith.constant 0 : i32
    %c0_i32_0 = arith.constant 0 : i32
    %c0_i32_1 = arith.constant 0 : i32
    return %c0_i32, %c0_i32_0 : i32, i32
  }
  func.func @transform_2(%arg0: i32, %arg1: i32) -> (i32, i32) {
    %c0_i32 = arith.constant 0 : i32
    %c0_i32_0 = arith.constant 0 : i32
    %c0_i32_1 = arith.constant 0 : i32
    return %c0_i32, %c0_i32_0 : i32, i32
  }
  func.func @transform_3(%arg0: i32, %arg1: i32) -> (i32, i32, i32) {
    %c0_i32 = arith.constant 0 : i32
    %c0_i32_0 = arith.constant 0 : i32
    return %arg0, %c0_i32, %arg1 : i32, i32, i32
  }
  func.func @transform_4(%arg0: i32, %arg1: i32) -> (i32, i32, i32) {
    %c0_i32 = arith.constant 0 : i32
    %c0_i32_0 = arith.constant 0 : i32
    return %arg0, %c0_i32, %arg1 : i32, i32, i32
  }
}

</mosaic_0001>

<llo_original>
// kernel: tpu_custom_call.1
$region0: #{tpu_custom_call.1}
  #allocation0 [shape = 'u32[]', space=smem, size = 0x4, offset = 0x4, fixed_abs, tag = 'smem constant byte address 0x4 - core index']
  #allocation1 [shape = 'u32[144,128]{1,0:T(1,128)}', space=vmem, size = 0x12000, scoped, tag = 'internal scratch']
  %s0 = inlined_call_operand.vmem [shape: f32[2,4,256], index: 0, kind: input, shape index: {}]
  %s1 = inlined_call_operand.vmem [shape: f32[8,4], index: 1, kind: input, shape index: {}]
  %s2 = inlined_call_operand.vmem [shape: f32[8,1], index: 2, kind: input, shape index: {}]
  %s3 = inlined_call_operand.vmem [shape: f32[2,4,256], index: 3, kind: input, shape index: {}]
  %s4 = inlined_call_operand.vmem [shape: f32[2,12,256], index: 4, kind: output, shape index: {}]
  %s5 = sld [smem:[#allocation0]]
  $region49: #{tpu_custom_call.1} parent=0
    _
  %s7 = ssub.s32 1, %s5
  %s8 = scalar_select 0, %s7, %s5
  loop: start=0, step=1, limit=4
  $region2: #{tpu_custom_call.1} parent=0 // loop_pre_header
    _
  $region3: #{tpu_custom_call.1} parent=0 // loop_header
    %s10 = sphi 0, %s14
    %p11 = scmp.ge.s32.totalorder %s10, 4
    %s17 = sphi 0, %s29
    %s18 = sphi 0, %s25
    %s19 = sphi 0, %s17
    %s20 = sphi 0, %s18
    %s21 = sphi 0, %s19
    %s22 = sphi 0, %s20
    %s34 = sphi 0, %s36
    %s37 = sphi 0, %s34
    %s38 = sphi 0, %s37
    %s54 = sphi 0, %s38
    %s58 = sphi 0, %s58
    %s60 = sphi 0, %s58
    %s61 = sphi 0, %s60
    %s75 = sphi 0, %s61
    %s79 = sphi 0, %s79
    %s81 = sphi 0, %s79
    %s82 = sphi 0, %s81
    %s96 = sphi 0, %s82
    %s104 = sphi 0, %s106
    %s107 = sphi 0, %s104
    %s108 = sphi 0, %s107
    %s124 = sphi 0, %s108
    %s132 = sphi 0, %s134
    %s135 = sphi 0, %s132
    %s136 = sphi 0, %s135
    %s152 = sphi 0, %s136
  $region4: #{tpu_custom_call.1} parent=0 // loop_header_branch
    %13 = sbr.rel (%p11) target = $region8
  $region5: #{tpu_custom_call.1} parent=0 // loop_body
    %s15 = ssub.s32 %s10, 1
    %s16 = ssub.s32 %s10, 2
    %s23 = sadd.s32 1, %s18
    %p24 = scmp.ge.s32.totalorder %s23, 1
    %s25 = scalar_select %p24, 0, %s23
    %s26 = sadd.s32 1, %s17
    %s27 = scalar_select %p24, %s26, %s17
    %p28 = scmp.ge.s32.totalorder %s27, 2
    %s29 = scalar_select %p28, 0, %s27
    %s30 = ssub.s32 %s17, %s29
    %s31 = ssub.s32 %s18, %s25
    %s32 = sor.u32 %s30, %s31
    %p33 = scmp.eq.s32.totalorder %s32, 0
    %s35 = sadd.s32 %s34, 1
    %s36 = scalar_select %p33, %s34, %s35
    %p39 = pneg %p33
    %p40 = scmp.eq.s32.totalorder %s10, 1
    %p41 = por %p39, %p40
    %p42 = scmp.ne.s32.totalorder %s34, %s37
    %p43 = scmp.eq.s32.totalorder %s10, 0
    %p44 = por %p42, %p43
    %p45 = scmp.ne.s32.totalorder %s34, %s37
    %p46 = scmp.eq.s32.totalorder %s15, 1
    %p47 = por %p45, %p46
    %p48 = scmp.ne.s32.totalorder %s37, %s38
    %p49 = scmp.eq.s32.totalorder %s15, 0
    %p50 = por %p48, %p49
    %p51 = scmp.ne.s32.totalorder %s37, %s38
    %p52 = scmp.eq.s32.totalorder %s16, 1
    %p53 = por %p51, %p52
    %p55 = scmp.ne.s32.totalorder %s38, %s54
    %p56 = scmp.eq.s32.totalorder %s16, 0
    %p57 = por %p55, %p56
    %s59 = sadd.s32 %s58, 1
    %p62 = scmp.eq.s32.totalorder %s10, 1
    %p63 = scmp.ne.s32.totalorder %s58, %s60
    %p64 = scmp.eq.s32.totalorder %s10, 0
    %p65 = por %p63, %p64
    %p66 = scmp.ne.s32.totalorder %s58, %s60
    %p67 = scmp.eq.s32.totalorder %s15, 1
    %p68 = por %p66, %p67
    %p69 = scmp.ne.s32.totalorder %s60, %s61
    %p70 = scmp.eq.s32.totalorder %s15, 0
    %p71 = por %p69, %p70
    %p72 = scmp.ne.s32.totalorder %s60, %s61
    %p73 = scmp.eq.s32.totalorder %s16, 1
    %p74 = por %p72, %p73
    %p76 = scmp.ne.s32.totalorder %s61, %s75
    %p77 = scmp.eq.s32.totalorder %s16, 0
    %p78 = por %p76, %p77
    %s80 = sadd.s32 %s79, 1
    %p83 = scmp.eq.s32.totalorder %s10, 1
    %p84 = scmp.ne.s32.totalorder %s79, %s81
    %p85 = scmp.eq.s32.totalorder %s10, 0
    %p86 = por %p84, %p85
    %p87 = scmp.ne.s32.totalorder %s79, %s81
    %p88 = scmp.eq.s32.totalorder %s15, 1
    %p89 = por %p87, %p88
    %p90 = scmp.ne.s32.totalorder %s81, %s82
    %p91 = scmp.eq.s32.totalorder %s15, 0
    %p92 = por %p90, %p91
    %p93 = scmp.ne.s32.totalorder %s81, %s82
    %p94 = scmp.eq.s32.totalorder %s16, 1
    %p95 = por %p93, %p94
    %p97 = scmp.ne.s32.totalorder %s82, %s96
    %p98 = scmp.eq.s32.totalorder %s16, 0
    %p99 = por %p97, %p98
    %s100 = ssub.s32 %s17, %s29
    %s101 = ssub.s32 %s18, %s25
    %s102 = sor.u32 %s100, %s101
    %p103 = scmp.eq.s32.totalorder %s102, 0
    %s105 = sadd.s32 %s104, 1
    %s106 = scalar_select %p103, %s104, %s105
    %p109 = pneg %p103
    %p110 = scmp.eq.s32.totalorder %s10, 1
    %p111 = por %p109, %p110
    %p112 = scmp.ne.s32.totalorder %s104, %s107
    %p113 = scmp.eq.s32.totalorder %s10, 0
    %p114 = por %p112, %p113
    %p115 = scmp.ne.s32.totalorder %s104, %s107
    %p116 = scmp.eq.s32.totalorder %s15, 1
    %p117 = por %p115, %p116
    %p118 = scmp.ne.s32.totalorder %s107, %s108
    %p119 = scmp.eq.s32.totalorder %s15, 0
    %p120 = por %p118, %p119
    %p121 = scmp.ne.s32.totalorder %s107, %s108
    %p122 = scmp.eq.s32.totalorder %s16, 1
    %p123 = por %p121, %p122
    %p125 = scmp.ne.s32.totalorder %s108, %s124
    %p126 = scmp.eq.s32.totalorder %s16, 0
    %p127 = por %p125, %p126
    %s128 = ssub.s32 %s17, %s29
    %s129 = ssub.s32 %s18, %s25
    %s130 = sor.u32 %s128, %s129
    %p131 = scmp.eq.s32.totalorder %s130, 0
    %s133 = sadd.s32 %s132, 1
    %s134 = scalar_select %p131, %s132, %s133
    %p137 = pneg %p131
    %p138 = scmp.eq.s32.totalorder %s10, 1
    %p139 = por %p137, %p138
    %p140 = scmp.ne.s32.totalorder %s132, %s135
    %p141 = scmp.eq.s32.totalorder %s10, 0
    %p142 = por %p140, %p141
    %p143 = scmp.ne.s32.totalorder %s132, %s135
    %p144 = scmp.eq.s32.totalorder %s15, 1
    %p145 = por %p143, %p144
    %p146 = scmp.ne.s32.totalorder %s135, %s136
    %p147 = scmp.eq.s32.totalorder %s15, 0
    %p148 = por %p146, %p147
    %p149 = scmp.ne.s32.totalorder %s135, %s136
    %p150 = scmp.eq.s32.totalorder %s16, 1
    %p151 = por %p149, %p150
    %p153 = scmp.ne.s32.totalorder %s136, %s152
    %p154 = scmp.eq.s32.totalorder %s16, 0
    %p155 = por %p153, %p154
    %p156 = scmp.le.s32.totalorder 1, %s10
    %p157 = scmp.lt.s32.totalorder %s10, 3
    %p158 = pnand %p156, %p157
    %p159 = pneg %p158
    // Predicated region
    $region9: #{tpu_custom_call.1} parent=5 // pred_check
      _
    $region10: #{tpu_custom_call.1} parent=5 // pred_check_branch
      %161 = sbr.rel (%p158) target = $region12
    $region11: #{tpu_custom_call.1} parent=5 // pred_region
      %s162 = ssub.s32 %s10, 1
      // Predicated region
      $region13: #{tpu_custom_call.1} parent=11 // pred_check
        %p163 = pneg %p71
      $region14: #{tpu_custom_call.1} parent=11 // pred_check_branch
        %165 = sbr.rel (%p163) target = $region16
      $region15: #{tpu_custom_call.1} parent=11 // pred_region
        _
      $region16: #{tpu_custom_call.1} parent=11 // pred_fallthru
        _
      // Predicated region
      $region17: #{tpu_custom_call.1} parent=11 // pred_check
        %p166 = pneg %p92
      $region18: #{tpu_custom_call.1} parent=11 // pred_check_branch
        %168 = sbr.rel (%p166) target = $region20
      $region19: #{tpu_custom_call.1} parent=11 // pred_region
        _
      $region20: #{tpu_custom_call.1} parent=11 // pred_fallthru
        _
    $region12: #{tpu_custom_call.1} parent=5 // pred_fallthru
      _
    %p169 = scmp.lt.s32.totalorder %s10, 2
    // Predicated region
    $region21: #{tpu_custom_call.1} parent=5 // pred_check
      %p170 = pneg %p169
    $region22: #{tpu_custom_call.1} parent=5 // pred_check_branch
      %172 = sbr.rel (%p170) target = $region24
    $region23: #{tpu_custom_call.1} parent=5 // pred_region
      // Predicated region
      $region25: #{tpu_custom_call.1} parent=23 // pred_check
        %p173 = pneg %p44
      $region26: #{tpu_custom_call.1} parent=23 // pred_check_branch
        %175 = sbr.rel (%p173) target = $region28
      $region27: #{tpu_custom_call.1} parent=23 // pred_region
        %s176 = smul.u32 2, %s18
        %p177 = scmp.lt.s32.totalorder %s17, 1
        %s178 = scalar_select %p177, %s17, 1
        %p179 = scmp.lt.s32.totalorder %s176, 1
        %s180 = scalar_select %p179, %s176, 1
        %s181 = smul.addr %s178, 2
        %s182 = sadd.s32 %s180, %s181
        %s183 = smul.addr %s182, 4
        %s184 = scalar_lea.vmem %s0, %s183
        %s185 = smul.u32 2, %s18
      $region28: #{tpu_custom_call.1} parent=23 // pred_fallthru
        _
      // Predicated region
      $region29: #{tpu_custom_call.1} parent=23 // pred_check
        %p186 = pneg %p114
      $region30: #{tpu_custom_call.1} parent=23 // pred_check_branch
        %188 = sbr.rel (%p186) target = $region32
      $region31: #{tpu_custom_call.1} parent=23 // pred_region
        %s189 = smul.u32 2, %s18
        %p190 = scmp.lt.s32.totalorder %s17, 1
        %s191 = scalar_select %p190, %s17, 1
        %p192 = scmp.lt.s32.totalorder %s189, 1
        %s193 = scalar_select %p192, %s189, 1
        %s194 = smul.addr %s191, 2
        %s195 = sadd.s32 %s193, %s194
        %s196 = smul.addr %s195, 4
        %s197 = scalar_lea.vmem %s3, %s196
        %s198 = smul.u32 2, %s18
      $region32: #{tpu_custom_call.1} parent=23 // pred_fallthru
        _
    $region24: #{tpu_custom_call.1} parent=5 // pred_fallthru
      _
    %p199 = scmp.le.s32.totalorder 1, %s10
    %p200 = scmp.lt.s32.totalorder %s10, 3
    %p201 = pnand %p199, %p200
    %p202 = pneg %p201
    // Predicated region
    $region33: #{tpu_custom_call.1} parent=5 // pred_check
      _
    $region34: #{tpu_custom_call.1} parent=5 // pred_check_branch
      %204 = sbr.rel (%p201) target = $region36
    $region35: #{tpu_custom_call.1} parent=5 // pred_region
      %s205 = ssub.s32 %s10, 1
      %s206 = smul.u32 2, %s20
      %p207 = scmp.lt.s32.totalorder %s19, 1
      %s208 = scalar_select %p207, %s19, 1
      %p209 = scmp.lt.s32.totalorder %s206, 1
      %s210 = scalar_select %p209, %s206, 1
      %s211 = smul.addr %s208, 2
      %s212 = sadd.s32 %s210, %s211
      %s213 = smul.addr %s212, 4
      %s214 = scalar_lea.vmem %s0, %s213
      %p215 = pneg %p50
      %p216 = pneg %p47
      %p217 = pneg %p71
      %p218 = pneg %p68
      %p219 = pneg %p92
      %p220 = pneg %p89
      %s221 = smul.u32 2, %s20
      %p222 = scmp.lt.s32.totalorder %s19, 1
      %s223 = scalar_select %p222, %s19, 1
      %p224 = scmp.lt.s32.totalorder %s221, 1
      %s225 = scalar_select %p224, %s221, 1
      %s226 = smul.addr %s223, 2
      %s227 = sadd.s32 %s225, %s226
      %s228 = smul.addr %s227, 4
      %s229 = scalar_lea.vmem %s3, %s228
      %p230 = pneg %p120
      %p231 = pneg %p117
      %p232 = pneg %p148
      %p233 = pneg %p145
      %s234 = smul.u32 2, %s20
      %p235 = scmp.lt.s32.totalorder %s19, 1
      %s236 = scalar_select %p235, %s19, 1
      %p237 = scmp.lt.s32.totalorder %s234, 1
      %s238 = scalar_select %p237, %s234, 1
      %s239 = smul.addr %s236, 4
      %s240 = sadd.s32 %s238, %s239
      %s241 = smul.addr %s240, 8
      %s242 = scalar_lea.vmem %s4, %s241
      %s243 = smul.u32 2, %s20
      %p244 = scmp.lt.s32.totalorder %s19, 1
      %s245 = scalar_select %p244, %s19, 1
      %p246 = scmp.lt.s32.totalorder %s243, 1
      %s247 = scalar_select %p246, %s243, 1
      %s248 = smul.addr %s245, 2
      %s249 = sadd.s32 %s247, %s248
      %s250 = smul.addr %s249, 4
      %s251 = scalar_lea.vmem %s0, %s250
      %s252 = smul.u32 2, %s20
      %s253 = smul.u32 2, %s20
      %p254 = scmp.lt.s32.totalorder %s19, 1
      %s255 = scalar_select %p254, %s19, 1
      %p256 = scmp.lt.s32.totalorder %s253, 1
      %s257 = scalar_select %p256, %s253, 1
      %s258 = smul.addr %s255, 2
      %s259 = sadd.s32 %s257, %s258
      %s260 = smul.addr %s259, 4
      %s261 = scalar_lea.vmem %s3, %s260
      %s262 = smul.u32 2, %s20
      %s263 = smul.u32 2, %s20
      %p264 = scmp.lt.s32.totalorder %s19, 1
      %s265 = scalar_select %p264, %s19, 1
      %p266 = scmp.lt.s32.totalorder %s263, 1
      %s267 = scalar_select %p266, %s263, 1
      %s268 = smul.addr %s265, 4
      %s269 = sadd.s32 %s267, %s268
      %s270 = smul.addr %s269, 8
      %s271 = scalar_lea.vmem %s4, %s270
      %s272 = smul.u32 2, %s20
      %v273 = vld [vmem:[%s251] sm:$0xff]
      %v274 = vld [vmem:[%s1] sm:$0xff]
      %v275 = vld [vmem:[%s2] sm:$0xff]
      %277 = vset.pattern.permute.xlu0 0
      %278 = vperm.xlu0 %277, %v275
      %v279 = vpop.permute.xlu0 %278
      %v282 = vcombine.high %v273, %v273
      %vm283 = vcmask 31744
      %v285 = vsel %vm283, %v274, 0
      %vm287 = vcmask 1043456
      %v288 = vsel %vm287, %v273, 0
      %v290 = vsel %vm287, %v282, 0
      %292 = vmatprep.subr.mxu0 %v290
      %293 = vmatpush1.msra.mxu0 %v288
      %294 = vmatprep.subr.mxu0 0.0
      %295 = vmatpush1.msra.mxu0 0.0
      %296 = vmatprep.subr.mxu0 0.0
      %297 = vmatpush1.msra.mxu0 0.0
      %298 = vmatprep.subr.mxu0 0.0
      %299 = vmatpush1.msra.mxu0 0.0
      %300 = vmatprep.subr.mxu0 0.0
      %301 = vmatpush1.msra.mxu0 0.0
      %302 = vmatprep.subr.mxu0 0.0
      %303 = vmatpush1.msra.mxu0 0.0
      %304 = vmatprep.subr.mxu0 0.0
      %305 = vmatpush1.msra.mxu0 0.0
      %306 = vmatprep.subr.mxu0 0.0
      %307 = vmatpush1.msra.mxu0 0.0
      %308 = vmatprep.subr.mxu0 0.0
      %309 = vmatpush1.msra.mxu0 0.0
      %310 = vmatprep.subr.mxu0 0.0
      %311 = vmatpush1.msra.mxu0 0.0
      %312 = vmatprep.subr.mxu0 0.0
      %313 = vmatpush1.msra.mxu0 0.0
      %314 = vmatprep.subr.mxu0 0.0
      %315 = vmatpush1.msra.mxu0 0.0
      %316 = vmatprep.subr.mxu0 0.0
      %317 = vmatpush1.msra.mxu0 0.0
      %318 = vmatprep.subr.mxu0 0.0
      %319 = vmatpush1.msra.mxu0 0.0
      %320 = vmatprep.subr.mxu0 0.0
      %321 = vmatpush1.msra.mxu0 0.0
      %322 = vmatprep.subr.mxu0 0.0
      %323 = vmatpush1.msra.mxu0 0.0
      %324 = vmatprep.subr.mxu0 0.0
      %325 = vmatpush1.msra.mxu0 0.0
      %326 = vmatprep.subr.mxu0 0.0
      %327 = vmatpush1.msra.mxu0 0.0
      %328 = vmatprep.subr.mxu0 0.0
      %329 = vmatpush1.msra.mxu0 0.0
      %330 = vmatprep.subr.mxu0 0.0
      %331 = vmatpush1.msra.mxu0 0.0
      %332 = vmatprep.subr.mxu0 0.0
      %333 = vmatpush1.msra.mxu0 0.0
      %334 = vmatprep.subr.mxu0 0.0
      %335 = vmatpush1.msra.mxu0 0.0
      %336 = vmatprep.subr.mxu0 0.0
      %337 = vmatpush1.msra.mxu0 0.0
      %338 = vmatprep.subr.mxu0 0.0
      %339 = vmatpush1.msra.mxu0 0.0
      %340 = vmatprep.subr.mxu0 0.0
      %341 = vmatpush1.msra.mxu0 0.0
      %342 = vmatprep.subr.mxu0 0.0
      %343 = vmatpush1.msra.mxu0 0.0
      %344 = vmatprep.subr.mxu0 0.0
      %345 = vmatpush1.msra.mxu0 0.0
      %346 = vmatprep.subr.mxu0 0.0
      %347 = vmatpush1.msra.mxu0 0.0
      %348 = vmatprep.subr.mxu0 0.0
      %349 = vmatpush1.msra.mxu0 0.0
      %350 = vmatprep.subr.mxu0 0.0
      %351 = vmatpush1.msra.mxu0 0.0
      %352 = vmatprep.subr.mxu0 0.0
      %353 = vmatpush1.msra.mxu0 0.0
      %354 = vmatprep.subr.mxu0 0.0
      %355 = vmatpush1.msra.mxu0 0.0
      %356 = vmatprep.mubr.f32.mxu0 0.0
      %357 = vmatmul.mubr.f32.gmra.mrb[0].mxu0 %v285
      %v358 = vpop.f32.mrb[0].mxu0
      %v359 = vadd.f32 %v279, %v358
      %v360 = vpop.f32.mrb[0].mxu0
      %v361 = vadd.f32 %v279, %v360
      %362 = vdwg.mxu0
      %363 = vst [vmem:[%s271] sm:$0xff] %v359
      %364 = vst [vmem:[%s271 + $0x8] sm:$0xff] %v361
      %v365 = vld [vmem:[%s261] sm:$0xff]
      %v367 = vcombine.high %v365, %v365
      %369 = vst [vmem:[%s271 + $0x10] sm:$0xf] %v365
      %370 = vst [vmem:[%s271 + $0x18] sm:$0xf] %v367
      %s371 = smul.u32 2, %s20
      %p372 = scmp.lt.s32.totalorder %s19, 1
      %s373 = scalar_select %p372, %s19, 1
      %p374 = scmp.lt.s32.totalorder %s371, 1
      %s375 = scalar_select %p374, %s371, 1
      %s376 = smul.addr %s373, 4
      %s377 = sadd.s32 %s375, %s376
      %s378 = smul.addr %s377, 8
      %s379 = scalar_lea.vmem %s4, %s378
      // Predicated region
      $region37: #{tpu_custom_call.1} parent=35 // pred_check
        %p380 = pneg %p145
      $region38: #{tpu_custom_call.1} parent=35 // pred_check_branch
        %382 = sbr.rel (%p380) target = $region40
      $region39: #{tpu_custom_call.1} parent=35 // pred_region
        %s383 = smul.u32 2, %s20
      $region40: #{tpu_custom_call.1} parent=35 // pred_fallthru
        _
    $region36: #{tpu_custom_call.1} parent=5 // pred_fallthru
      _
    %p384 = scmp.le.s32.totalorder 2, %s10
    // Predicated region
    $region41: #{tpu_custom_call.1} parent=5 // pred_check
      %p385 = pneg %p384
    $region42: #{tpu_custom_call.1} parent=5 // pred_check_branch
      %387 = sbr.rel (%p385) target = $region44
    $region43: #{tpu_custom_call.1} parent=5 // pred_region
      %s388 = ssub.s32 %s10, 2
      // Predicated region
      $region45: #{tpu_custom_call.1} parent=43 // pred_check
        %p389 = pneg %p151
      $region46: #{tpu_custom_call.1} parent=43 // pred_check_branch
        %391 = sbr.rel (%p389) target = $region48
      $region47: #{tpu_custom_call.1} parent=43 // pred_region
        %s392 = smul.u32 2, %s22
        %p393 = scmp.lt.s32.totalorder %s21, 1
        %s394 = scalar_select %p393, %s21, 1
        %p395 = scmp.lt.s32.totalorder %s392, 1
        %s396 = scalar_select %p395, %s392, 1
        %s397 = smul.addr %s394, 4
        %s398 = sadd.s32 %s396, %s397
        %s399 = smul.addr %s398, 8
        %s400 = scalar_lea.vmem %s4, %s399
      $region48: #{tpu_custom_call.1} parent=43 // pred_fallthru
        _
    $region44: #{tpu_custom_call.1} parent=5 // pred_fallthru
      _
  $region6: #{tpu_custom_call.1} parent=0 // loop_footer
    %s14 = sadd.s32 1, %s10
  $region7: #{tpu_custom_call.1} parent=0 // loop_footer_branch
    %9 = sbr.rel target = $region3
  $region8: #{tpu_custom_call.1} parent=0 // loop_exit
    _

</llo_original>
